<compile_context>
chip_gen: v7x
topology: tpu7x:2x2x1
jax: 0.10.0
libtpu: 0.0.40
codegen_flags: <defaults>
</compile_context>

<pallas_src>
import jax
import jax.numpy as jnp
from jax.experimental import pallas as pl
from jax.experimental.pallas import tpu as pltpu


def _conv1d_matmul_kernel(w_ref, x_ref, o_ref):
    # w_ref: (C_out_p, C_in*K_p) — whole reshaped weight, resident in VMEM
    # x_ref: (C_in*K_p, TL)      — one lane tile of the im2col'd input
    # o_ref: (C_out_p, TL)       — matching lane-dense output tile
    o_ref[...] = jnp.dot(
        w_ref[...], x_ref[...], preferred_element_type=jnp.float32
    ).astype(o_ref.dtype)


def _round_up(v, m):
    return ((v + m - 1) // m) * m


def basic_conv1d(x, w, *, stride=1, padding=0, dilation=1,
                 compute_dtype=None, lane_tile=1024):
    """Conv1d forward, bias=False (nn.Conv1d semantics).

    x: (N, C_in, L), w: (C_out, C_in, K) -> (N, C_out, L_out)
    """
    n, c_in, l = x.shape
    c_out, c_in_w, k = w.shape
    assert c_in == c_in_w, "channel mismatch"

    if padding:
        x = jnp.pad(x, ((0, 0), (0, 0), (padding, padding)))
        l = l + 2 * padding
    l_out = (l - dilation * (k - 1) - 1) // stride + 1
    assert l_out > 0, "effective kernel longer than (padded) input"

    out_dtype = x.dtype
    if compute_dtype is None:
        compute_dtype = x.dtype

    # ---------- layout pass in the wrapper (XLA does this once) ----------
    l_out_p = _round_up(l_out, 128)          # lane-dense per-batch output rows

    x_t = jnp.transpose(x, (1, 0, 2))        # (C_in, N, L)
    # K statically shifted (strided) views -> (C_in, K, N, L_out); row = c*K + k
    cols = jnp.stack(
        [x_t[:, :, kk * dilation:kk * dilation + (l_out - 1) * stride + 1:stride]
         for kk in range(k)],
        axis=1)
    cols = jnp.pad(cols, ((0, 0), (0, 0), (0, 0), (0, l_out_p - l_out)))

    ck = c_in * k
    ck_p = _round_up(ck, 8)                  # sublane-aligned contraction depth
    c_out_p = _round_up(c_out, 8)            # sublane-aligned output rows
    total = n * l_out_p

    x_col = cols.reshape(ck, total)
    if ck_p != ck:
        x_col = jnp.pad(x_col, ((0, ck_p - ck), (0, 0)))
    x_col = x_col.astype(compute_dtype)

    w_flat = w.reshape(c_out, ck)
    if ck_p != ck or c_out_p != c_out:
        w_flat = jnp.pad(w_flat, ((0, c_out_p - c_out), (0, ck_p - ck)))
    w_flat = w_flat.astype(compute_dtype)    # (C_out_p, C_in*K_p)

    # ---------- lane tiling, bounded by a VMEM budget ----------
    in_bytes = jnp.dtype(compute_dtype).itemsize
    out_bytes = jnp.dtype(out_dtype).itemsize
    vmem_budget = 12 * 1024 * 1024           # conservative (v7x has 32 MiB scoped default)
    weight_bytes = 2 * ck_p * c_out_p * in_bytes            # double-buffered (resident)
    per_col = 2 * (ck_p * in_bytes + c_out_p * out_bytes)   # dbl-buffered in + out per lane
    max_tl = max(128, (vmem_budget - weight_bytes) // max(per_col, 1))
    tl = min(lane_tile, total, max_tl)
    tl = max(128, (tl // 128) * 128)
    num_tiles = pl.cdiv(total, tl)
    total_p = num_tiles * tl
    if total_p != total:                     # full, unmasked edge tile
        x_col = jnp.pad(x_col, ((0, 0), (0, total_p - total)))

    cost = pl.CostEstimate(
        flops=2 * c_out_p * ck_p * total_p,
        transcendentals=0,
        bytes_accessed=(x_col.size * in_bytes + w_flat.size * in_bytes
                        + c_out_p * total_p * out_bytes),
    )

    out2d = pl.pallas_call(
        _conv1d_matmul_kernel,
        out_shape=jax.ShapeDtypeStruct((c_out_p, total_p), out_dtype),
        grid=(num_tiles,),
        in_specs=[
            pl.BlockSpec((c_out_p, ck_p), lambda j: (0, 0)),   # whole weight, stays resident
            pl.BlockSpec((ck_p, tl), lambda j: (0, j)),        # one lane tile
        ],
        out_specs=pl.BlockSpec((c_out_p, tl), lambda j: (0, j)),
        compiler_params=pltpu.CompilerParams(
            dimension_semantics=("parallel",)),
        cost_estimate=cost,
    )(w_flat, x_col)

    # Crop padding, un-fold lanes back to (N, C_out, L_out).
    out = out2d[:c_out, :total].reshape(c_out, n, l_out_p)
    out = out.transpose(1, 0, 2)[:, :, :l_out]
    return out


if __name__ == "__main__":
    # Small shapes consistent with BasicConv1d usage.
    N, C_IN, C_OUT, L, K = 2, 4, 8, 16, 3

    key = jax.random.PRNGKey(0)
    kx, kw = jax.random.split(key)

    x = jax.random.normal(kx, (N, C_IN, L), dtype=jnp.float32)

    # Deterministic weight init mimicking PyTorch Conv1d default
    # (kaiming-uniform with bound = 1/sqrt(C_in * K)).
    bound = 1.0 / jnp.sqrt(jnp.float32(C_IN * K))
    w = jax.random.uniform(kw, (C_OUT, C_IN, K), dtype=jnp.float32,
                           minval=-bound, maxval=bound)

    out = basic_conv1d(x, w)
    out = jax.block_until_ready(out)

    # Reference with the same semantics as torch.nn.Conv1d(bias=False, stride=1, padding=0).
    ref = jax.lax.conv_general_dilated(
        x, w, window_strides=(1,), padding="VALID",
        dimension_numbers=("NCH", "OIH", "NCH"))
    assert out.shape == (N, C_OUT, L - K + 1)
    assert jnp.allclose(out, ref, atol=1e-5, rtol=1e-5)

    # bf16 compute path (halves HBM bytes on the mem-bound roofline; f32 accumulate).
    out_bf16 = jax.block_until_ready(basic_conv1d(x, w, compute_dtype=jnp.bfloat16))
    assert jnp.allclose(out_bf16, ref, atol=2e-2, rtol=2e-2)

    # Non-default hyperparameters (stride=2, padding=1), checked against XLA conv.
    out_sp = jax.block_until_ready(basic_conv1d(x, w, stride=2, padding=1))
    ref_sp = jax.lax.conv_general_dilated(
        x, w, window_strides=(2,), padding=((1, 1),),
        dimension_numbers=("NCH", "OIH", "NCH"))
    assert out_sp.shape == ref_sp.shape
    assert jnp.allclose(out_sp, ref_sp, atol=1e-5, rtol=1e-5)

    print("KERNEL_OK")
</pallas_src>

<mosaic_0001>
module attributes {stable_mosaic.version = 11 : i64} {
  func.func @_conv1d_matmul_kernel(%arg0: i32, %arg1: memref<8x16xf32, #tpu.memory_space<vmem>>, %arg2: memref<16x256xf32, #tpu.memory_space<vmem>>, %arg3: memref<8x256xf32, #tpu.memory_space<vmem>>) attributes {dimension_semantics = [#tpu.dimension_semantics<parallel>], iteration_bounds = array<i64: 1>, scalar_prefetch = 0 : i64, scratch_operands = 0 : i64, tpu.core_type = #tpu.core_type<tc>, window_params = [{pipeline_mode = #tpu.pipeline_mode<synchronous>, transform_indices = @transform_0, window_bounds = array<i64: 8, 16>}, {transform_indices = @transform_1, window_bounds = array<i64: 16, 256>}, {transform_indices = @transform_2, window_bounds = array<i64: 8, 256>}]} {
    %c0 = arith.constant 0 : index
    %c0_0 = arith.constant 0 : index
    %0 = vector.load %arg1[%c0, %c0_0] : memref<8x16xf32, #tpu.memory_space<vmem>>, vector<8x16xf32>
    %c0_1 = arith.constant 0 : index
    %c0_2 = arith.constant 0 : index
    %1 = vector.load %arg2[%c0_1, %c0_2] : memref<16x256xf32, #tpu.memory_space<vmem>>, vector<16x256xf32>
    %cst = arith.constant dense<0.000000e+00> : vector<8x256xf32>
    %2 = tpu.matmul %0, %1, %cst {dimension_numbers = #tpu.dot_dimension_numbers<[1], [0], [0], [1], [0, 0, 1, 1], [], []>} : vector<8x16xf32>, vector<16x256xf32>, vector<8x256xf32> -> vector<8x256xf32>
    %c0_3 = arith.constant 0 : index
    %c0_4 = arith.constant 0 : index
    %3 = vector.load %arg3[%c0_3, %c0_4] : memref<8x256xf32, #tpu.memory_space<vmem>>, vector<8x256xf32>
    tpu.vector_store %arg3[%c0_3, %c0_4], %2 {strides = array<i32>} : memref<8x256xf32, #tpu.memory_space<vmem>>, vector<8x256xf32>,
    return
  }
  func.func @transform_0(%arg0: i32) -> (i32, i32) {
    %c0_i32 = arith.constant 0 : i32
    %c0_i32_0 = arith.constant 0 : i32
    %c0_i32_1 = arith.constant 0 : i32
    return %c0_i32, %c0_i32_0 : i32, i32
  }
  func.func @transform_1(%arg0: i32) -> (i32, i32) {
    %c0_i32 = arith.constant 0 : i32
    %c0_i32_0 = arith.constant 0 : i32
    return %c0_i32, %arg0 : i32, i32
  }
  func.func @transform_2(%arg0: i32) -> (i32, i32) {
    %c0_i32 = arith.constant 0 : i32
    %c0_i32_0 = arith.constant 0 : i32
    return %c0_i32, %arg0 : i32, i32
  }
}

</mosaic_0001>

<llo_original>
// kernel: tpu_custom_call.1
$region0: #{tpu_custom_call.1}
  #allocation0 [shape = 'u32[]', space=smem, size = 0x4, offset = 0x4, fixed_abs, tag = 'smem constant byte address 0x4 - core index']
  #allocation1 [shape = 'u32[144,128]{1,0:T(1,128)}', space=vmem, size = 0x12000, scoped, tag = 'internal scratch']
  %s0 = inlined_call_operand.hbm [shape: f32[8,16], index: 0, kind: input, shape index: {}]
  %s1 = inlined_call_operand.hbm [shape: f32[16,256], index: 1, kind: input, shape index: {}]
  %s2 = inlined_call_operand.hbm [shape: f32[8,256], index: 2, kind: output, shape index: {}]
  %s3 = sld [smem:[#allocation0]]
  $region26: #{tpu_custom_call.1} parent=0
    _
  %s5 = ssub.s32 1, %s3
  %s6 = scalar_select 0, %s5, %s3
  $region1: #{tpu_custom_call.1} parent=0
    #allocation2 [shape = 'u8[4096]{0}', space=vmem, size = 0x1000, scoped, tag = 'input window, operand 0, single buffered']
    #allocation3 [shape = 's32[1]{0}', space=sflag, size = 0x4, scoped, tag = 'scoped memory for tpu_custom_call.1']
    #allocation4 [shape = 's32[1]{0}', space=sflag, size = 0x4, scoped, tag = 'scoped memory for tpu_custom_call.1']
    #allocation5 [shape = 'u8[16384]{0}', space=vmem, size = 0x4000, scoped, tag = 'input window, operand 1, single buffered']
    #allocation6 [shape = 's32[1]{0}', space=sflag, size = 0x4, scoped, tag = 'scoped memory for tpu_custom_call.1']
    #allocation7 [shape = 'u8[8192]{0}', space=vmem, size = 0x2000, scoped, tag = 'output window, operand 0, single buffered']
    %7 = vsyncpa [#allocation3], 0
    %8 = vsyncpa [#allocation6], 0
    %9 = vsyncpa [#allocation4], 0
    // Predicated region
    $region2: #{tpu_custom_call.1} parent=1 // pred_check
      _
    $region3: #{tpu_custom_call.1} parent=1 // pred_check_branch
      %11 = sbr.rel (0) target = $region5
    $region4: #{tpu_custom_call.1} parent=1 // pred_region
      %s13 = ssub.s32 128, 128
      %14 = vsyncadd [#allocation3], %s13
      %s16 = sshll.u32 [#allocation2], 4
      %s17 = int_to_ptr.vmem [resolvable:$true] %s16
      %19 = dma.hbm_to_vmem [thread:$0]  %s0, 128, %s17, [#allocation3]
    $region5: #{tpu_custom_call.1} parent=1 // pred_fallthru
      _
    // Predicated region
    $region6: #{tpu_custom_call.1} parent=1 // pred_check
      _
    $region7: #{tpu_custom_call.1} parent=1 // pred_check_branch
      %21 = sbr.rel (0) target = $region9
    $region8: #{tpu_custom_call.1} parent=1 // pred_region
      %s23 = ssub.s32 512, 512
      %24 = vsyncadd [#allocation6], %s23
      %s25 = sshll.u32 [#allocation5], 4
      %s26 = int_to_ptr.vmem [resolvable:$true] %s25
      %31 = dma.hbm_to_vmem [thread:$0]  %s1, 512, %s26, [#allocation6], 256, 256, 16
    $region9: #{tpu_custom_call.1} parent=1 // pred_fallthru
      _
    // Predicated region
    $region10: #{tpu_custom_call.1} parent=1 // pred_check
      _
    $region11: #{tpu_custom_call.1} parent=1 // pred_check_branch
      %33 = sbr.rel (0) target = $region13
    $region12: #{tpu_custom_call.1} parent=1 // pred_region
      %34 = dma.done [#allocation3], 128
    $region13: #{tpu_custom_call.1} parent=1 // pred_fallthru
      _
    // Predicated region
    $region14: #{tpu_custom_call.1} parent=1 // pred_check
      _
    $region15: #{tpu_custom_call.1} parent=1 // pred_check_branch
      %36 = sbr.rel (0) target = $region17
    $region16: #{tpu_custom_call.1} parent=1 // pred_region
      %37 = dma.done [#allocation6], 512
    $region17: #{tpu_custom_call.1} parent=1 // pred_fallthru
      _
    %v38 = vld [vmem:[#allocation2] sm:$0xff]
    %v39 = vld [vmem:[#allocation5] sm:$0xff]
    %v40 = vld [vmem:[#allocation5 + $0x8] sm:$0xff]
    %v41 = vld [vmem:[#allocation5 + $0x10] sm:$0xff]
    %v42 = vld [vmem:[#allocation5 + $0x18] sm:$0xff]
    %vm43 = vcmask 130048
    %v45 = vsel %vm43, %v38, 0
    %47 = vmatprep.subr.mxu0 %v40
    %48 = vmatpush1.msra.mxu0 %v39
    %49 = vmatprep.subr.mxu0 %v42
    %50 = vmatpush1.msra.mxu0 %v41
    %51 = vmatprep.subr.mxu0 0.0
    %52 = vmatpush1.msra.mxu0 0.0
    %53 = vmatprep.subr.mxu0 0.0
    %54 = vmatpush1.msra.mxu0 0.0
    %55 = vmatprep.subr.mxu0 0.0
    %56 = vmatpush1.msra.mxu0 0.0
    %57 = vmatprep.subr.mxu0 0.0
    %58 = vmatpush1.msra.mxu0 0.0
    %59 = vmatprep.subr.mxu0 0.0
    %60 = vmatpush1.msra.mxu0 0.0
    %61 = vmatprep.subr.mxu0 0.0
    %62 = vmatpush1.msra.mxu0 0.0
    %63 = vmatprep.subr.mxu0 0.0
    %64 = vmatpush1.msra.mxu0 0.0
    %65 = vmatprep.subr.mxu0 0.0
    %66 = vmatpush1.msra.mxu0 0.0
    %67 = vmatprep.subr.mxu0 0.0
    %68 = vmatpush1.msra.mxu0 0.0
    %69 = vmatprep.subr.mxu0 0.0
    %70 = vmatpush1.msra.mxu0 0.0
    %71 = vmatprep.subr.mxu0 0.0
    %72 = vmatpush1.msra.mxu0 0.0
    %73 = vmatprep.subr.mxu0 0.0
    %74 = vmatpush1.msra.mxu0 0.0
    %75 = vmatprep.subr.mxu0 0.0
    %76 = vmatpush1.msra.mxu0 0.0
    %77 = vmatprep.subr.mxu0 0.0
    %78 = vmatpush1.msra.mxu0 0.0
    %79 = vmatprep.subr.mxu0 0.0
    %80 = vmatpush1.msra.mxu0 0.0
    %81 = vmatprep.subr.mxu0 0.0
    %82 = vmatpush1.msra.mxu0 0.0
    %83 = vmatprep.subr.mxu0 0.0
    %84 = vmatpush1.msra.mxu0 0.0
    %85 = vmatprep.subr.mxu0 0.0
    %86 = vmatpush1.msra.mxu0 0.0
    %87 = vmatprep.subr.mxu0 0.0
    %88 = vmatpush1.msra.mxu0 0.0
    %89 = vmatprep.subr.mxu0 0.0
    %90 = vmatpush1.msra.mxu0 0.0
    %91 = vmatprep.subr.mxu0 0.0
    %92 = vmatpush1.msra.mxu0 0.0
    %93 = vmatprep.subr.mxu0 0.0
    %94 = vmatpush1.msra.mxu0 0.0
    %95 = vmatprep.subr.mxu0 0.0
    %96 = vmatpush1.msra.mxu0 0.0
    %97 = vmatprep.subr.mxu0 0.0
    %98 = vmatpush1.msra.mxu0 0.0
    %99 = vmatprep.subr.mxu0 0.0
    %100 = vmatpush1.msra.mxu0 0.0
    %101 = vmatprep.subr.mxu0 0.0
    %102 = vmatpush1.msra.mxu0 0.0
    %103 = vmatprep.subr.mxu0 0.0
    %104 = vmatpush1.msra.mxu0 0.0
    %105 = vmatprep.subr.mxu0 0.0
    %106 = vmatpush1.msra.mxu0 0.0
    %107 = vmatprep.subr.mxu0 0.0
    %108 = vmatpush1.msra.mxu0 0.0
    %109 = vmatprep.subr.mxu0 0.0
    %110 = vmatpush1.msra.mxu0 0.0
    %111 = vmatprep.mubr.f32.mxu0 0.0
    %112 = vmatmul.mubr.f32.gmra.mrb[0].mxu0 %v45
    %v113 = vpop.f32.mrb[0].mxu0
    %v114 = vadd.f32 0.0, %v113
    %v115 = vpop.f32.mrb[0].mxu0
    %v116 = vadd.f32 0.0, %v115
    %117 = vdwg.mxu0
    %118 = vst [vmem:[#allocation7] sm:$0xff] %v114
    %119 = vst [vmem:[#allocation7 + $0x8] sm:$0xff] %v116
    // Predicated region
    $region18: #{tpu_custom_call.1} parent=1 // pred_check
      _
    $region19: #{tpu_custom_call.1} parent=1 // pred_check_branch
      %121 = sbr.rel (0) target = $region21
    $region20: #{tpu_custom_call.1} parent=1 // pred_region
      %s123 = ssub.s32 256, 256
      %124 = vsyncadd [#allocation4], %s123
      %s126 = sshll.u32 [#allocation7], 4
      %s127 = int_to_ptr.vmem [resolvable:$true] %s126
      %129 = dma.vmem_to_hbm [thread:$0]  %s127, 256, %s2, [#allocation4]
    $region21: #{tpu_custom_call.1} parent=1 // pred_fallthru
      _
    // Predicated region
    $region22: #{tpu_custom_call.1} parent=1 // pred_check
      _
    $region23: #{tpu_custom_call.1} parent=1 // pred_check_branch
      %131 = sbr.rel (0) target = $region25
    $region24: #{tpu_custom_call.1} parent=1 // pred_region
      %132 = dma.done [#allocation4], 256
    $region25: #{tpu_custom_call.1} parent=1 // pred_fallthru
      _
    %133 = vsyncpa [#allocation3], 1
    %134 = vsyncpa [#allocation6], 1
    %135 = vsyncpa [#allocation4], 1

</llo_original>
